<compile_context>
chip_gen: v6e
topology: v6e:2x2x1
jax: 0.10.0
libtpu: 0.0.40
codegen_flags: <defaults>
</compile_context>

<pallas_src>
import functools
import math

import jax
import jax.numpy as jnp
from jax.experimental import pallas as pl
from jax.experimental.pallas import tpu as pltpu


# --------------------------------------------------------------------------- utils

def _round_up(x, m):
    return ((x + m - 1) // m) * m


@functools.lru_cache(maxsize=None)
def _vmem_capacity_bytes():
    # Generation-gated VMEM sizing; conservative fallback if the query is unavailable.
    try:
        return int(pltpu.get_tpu_info().vmem_capacity_bytes)
    except Exception:
        return 64 * 1024 * 1024


def _vmem_limit_bytes():
    # Half of physical VMEM: 64 MiB on v5e/v6e (128 MiB phys), 32 MiB on v7x (64 MiB).
    return min(_vmem_capacity_bytes() // 2, 64 * 1024 * 1024)


def _tile_budget_bytes():
    # Padded per-buffer budget; 4 live buffers (in+out, double-buffered) stay well
    # under the scoped limit: ~8 MiB on v5e/v6e, ~4 MiB on v7x.
    return _vmem_capacity_bytes() // 16


def _cost(x):
    return pl.CostEstimate(flops=0, transcendentals=0,
                           bytes_accessed=2 * x.size * x.dtype.itemsize)


# ------------------------------------------------------ non-last-dim roll: pure DMA

_MAX_DMA_CHUNKS = 4  # lead-chunks per segment kept in flight simultaneously


def _dma_roll_kernel(x_ref, o_ref, sem_ref, *, seg_len, total, chunk_rows):
    """HBM->HBM roll of the last axis of a (lead, total) view by `seg_len` elements.

    out[:, 0:seg_len]     = x[:, total-seg_len : total]
    out[:, seg_len:total] = x[:, 0 : total-seg_len]
    Each segment is split into lead-chunks so several DMAs are in flight at once.
    Everything here is static Python, so it unrolls into a fixed set of descriptors.
    """
    segments = ((total - seg_len, 0, seg_len),          # (src_off, dst_off, length)
                (0, seg_len, total - seg_len))
    copies = []
    idx = 0
    for row0, rows in chunk_rows:
        for src, dst, length in segments:
            cp = pltpu.make_async_copy(
                x_ref.at[pl.ds(row0, rows), pl.ds(src, length)],
                o_ref.at[pl.ds(row0, rows), pl.ds(dst, length)],
                sem_ref.at[idx])
            cp.start()
            copies.append(cp)
            idx += 1
    for cp in copies:
        cp.wait()


def _roll_major_dma(x, s, dim):
    """Roll along any non-last dim: two strided HBM->HBM slab copies, no VMEM."""
    shape = x.shape
    size = shape[dim]
    lead = math.prod(shape[:dim])
    rest = math.prod(shape[dim + 1:])
    total = size * rest
    seg_len = s * rest            # rolling dim by s == rolling (size*rest) by s*rest

    x2 = x.reshape(lead, total)

    n_chunks = min(_MAX_DMA_CHUNKS, lead)
    base, extra = divmod(lead, n_chunks)
    chunk_rows = []
    row0 = 0
    for c in range(n_chunks):
        rows = base + (1 if c < extra else 0)
        if rows:
            chunk_rows.append((row0, rows))
            row0 += rows
    chunk_rows = tuple(chunk_rows)
    n_dma = 2 * len(chunk_rows)

    kernel = functools.partial(_dma_roll_kernel, seg_len=seg_len, total=total,
                               chunk_rows=chunk_rows)
    out = pl.pallas_call(
        kernel,
        out_shape=jax.ShapeDtypeStruct((lead, total), x.dtype),
        in_specs=[pl.BlockSpec(memory_space=pl.ANY)],
        out_specs=pl.BlockSpec(memory_space=pl.ANY),
        scratch_shapes=[pltpu.SemaphoreType.DMA((n_dma,))],
        cost_estimate=_cost(x),
    )(x2)
    return out.reshape(shape)


# --------------------------------------------------------------- last-dim (lane) roll

def _lane_roll_kernel(x_ref, o_ref, *, s, use_xlu):
    x = x_ref[...]
    if use_xlu:
        # Single XLU rotate + one unmasked full-tile store.
        o_ref[...] = pltpu.roll(x, shift=s, axis=1)
    else:
        # Lane dim not 128-aligned: stores are edge-masked regardless; use the
        # proven two-sliced-store form.
        w = x.shape[1]
        o_ref[:, 0:s] = x[:, w - s:w]
        o_ref[:, s:w] = x[:, 0:w - s]


def _roll_lane(x, s):
    """Roll the last (lane) axis: rolled axis whole in-block, lead cdiv-tiled."""
    shape = x.shape
    w = shape[-1]
    lead = math.prod(shape[:-1])
    itemsize = x.dtype.itemsize

    x2 = x.reshape(lead, w)

    sub_min = max(8, 32 // itemsize)       # min sublane granularity for the dtype
    w_pad = _round_up(w, 128)              # (8,128)-padded VMEM footprint per row
    budget = _tile_budget_bytes()

    if lead * w_pad * itemsize <= budget:
        tl = lead                          # whole array in one block
    else:
        rows = (budget // (w_pad * itemsize) // sub_min) * sub_min
        tl = min(max(sub_min, rows), lead)
    grid = (pl.cdiv(lead, tl),)

    kernel = functools.partial(_lane_roll_kernel, s=s, use_xlu=(w % 128 == 0))
    out = pl.pallas_call(
        kernel,
        out_shape=jax.ShapeDtypeStruct((lead, w), x.dtype),
        grid=grid,
        in_specs=[pl.BlockSpec((tl, w), lambda i: (i, 0))],
        out_specs=pl.BlockSpec((tl, w), lambda i: (i, 0)),
        compiler_params=pltpu.CompilerParams(
            dimension_semantics=("parallel",),
            vmem_limit_bytes=_vmem_limit_bytes()),
        cost_estimate=_cost(x),
    )(x2)
    return out.reshape(shape)


# ------------------------------------------------------------------------ public op

def roll(x, shift, dim):
    """Pallas-backed equivalent of Roll(shift, dim).forward(x) == jnp.roll(x, shift, dim)."""
    x = jnp.asarray(x)
    ndim = x.ndim
    dim = dim % ndim
    size = x.shape[dim]
    s = int(shift) % size          # negative shifts normalize to the same positive roll
    if s == 0:
        return x
    if dim == ndim - 1:
        return _roll_lane(x, s)
    return _roll_major_dma(x, s, dim)


# ----------------------------------------------------------------------------- test

if __name__ == "__main__":
    key = jax.random.PRNGKey(0)
    k1, k2 = jax.random.split(key)

    # NCHW image-ish tensor (the autodisc use case) + a lane-aligned tensor that
    # exercises the pltpu.roll (XLU) fast path on the last dim.
    x_img = jax.random.normal(k1, (2, 4, 16, 16), dtype=jnp.float32)
    x_ali = jax.random.normal(k2, (2, 4, 8, 128), dtype=jnp.float32)

    cases = [
        (x_img, 3, 3), (x_img, -5, 2), (x_img, 7, 1), (x_img, 1, 0),
        (x_img, 0, 3), (x_img, -2, 3),
        (x_ali, 5, 3), (x_ali, -17, 3), (x_ali, 3, 1),
    ]

    ok = True
    for xin, shift, dim in cases:
        y = roll(xin, shift, dim)
        jax.block_until_ready(y)
        ref = jnp.roll(xin, shift, axis=dim)   # reference semantics of the torch module
        ok = ok and bool(jnp.array_equal(y, ref))

    if ok:
        print("KERNEL_OK")
</pallas_src>

<mosaic_0001>
module attributes {stable_mosaic.version = 11 : i64} {
  func.func @_lane_roll_kernel(%arg0: i32, %arg1: memref<128x16xf32, #tpu.memory_space<vmem>>, %arg2: memref<128x16xf32, #tpu.memory_space<vmem>>) attributes {dimension_semantics = [#tpu.dimension_semantics<parallel>], iteration_bounds = array<i64: 1>, scalar_prefetch = 0 : i64, scratch_operands = 0 : i64, tpu.core_type = #tpu.core_type<tc>, window_params = [{transform_indices = @transform_0, window_bounds = array<i64: 128, 16>}, {transform_indices = @transform_1, window_bounds = array<i64: 128, 16>}]} {
    %c0 = arith.constant 0 : index
    %c0_0 = arith.constant 0 : index
    %0 = vector.load %arg1[%c0, %c0_0] : memref<128x16xf32, #tpu.memory_space<vmem>>, vector<128x16xf32>
    %1 = vector.extract_strided_slice %0 {offsets = [0, 13], sizes = [128, 3], strides = [1, 1]} : vector<128x16xf32> to vector<128x3xf32>
    %c0_1 = arith.constant 0 : index
    %c0_2 = arith.constant 0 : index
    %2 = vector.load %arg2[%c0_1, %c0_2] : memref<128x16xf32, #tpu.memory_space<vmem>>, vector<128x3xf32>
    tpu.vector_store %arg2[%c0_1, %c0_2], %1 {strides = array<i32>} : memref<128x16xf32, #tpu.memory_space<vmem>>, vector<128x3xf32>,
    %3 = vector.extract_strided_slice %0 {offsets = [0, 0], sizes = [128, 13], strides = [1, 1]} : vector<128x16xf32> to vector<128x13xf32>
    %c0_3 = arith.constant 0 : index
    %c3 = arith.constant 3 : index
    %4 = vector.load %arg2[%c0_3, %c3] : memref<128x16xf32, #tpu.memory_space<vmem>>, vector<128x13xf32>
    tpu.vector_store %arg2[%c0_3, %c3], %3 {strides = array<i32>} : memref<128x16xf32, #tpu.memory_space<vmem>>, vector<128x13xf32>,
    return
  }
  func.func @transform_0(%arg0: i32) -> (i32, i32) {
    %c0_i32 = arith.constant 0 : i32
    %c0_i32_0 = arith.constant 0 : i32
    return %arg0, %c0_i32 : i32, i32
  }
  func.func @transform_1(%arg0: i32) -> (i32, i32) {
    %c0_i32 = arith.constant 0 : i32
    %c0_i32_0 = arith.constant 0 : i32
    return %arg0, %c0_i32 : i32, i32
  }
}

</mosaic_0001>

<llo_original>
// kernel: tpu_custom_call.1
$region0: #{tpu_custom_call.1}
  #allocation0 [shape = 'u32[]', space=smem, size = 0x4, offset = 0x4, fixed_abs, tag = 'smem constant byte address 0x4 - core index']
  #allocation1 [shape = 'u32[144,128]{1,0:T(1,128)}', space=vmem, size = 0x12000, scoped, tag = 'internal scratch']
  %s0 = inlined_call_operand.vmem [shape: f32[128,16], index: 0, kind: input, shape index: {}]
  %s1 = inlined_call_operand.vmem [shape: f32[128,16], index: 1, kind: output, shape index: {}]
  %s2 = sld [smem:[#allocation0]]
  $region14: #{tpu_custom_call.1} parent=0
    _
  %s4 = ssub.s32 1, %s2
  %s5 = scalar_select 0, %s4, %s2
  // Predicated region
  $region2: #{tpu_custom_call.1} parent=0 // pred_check
    _
  $region3: #{tpu_custom_call.1} parent=0 // pred_check_branch
    %7 = sbr.rel (0) target = $region5
  $region4: #{tpu_custom_call.1} parent=0 // pred_region
    _
  $region5: #{tpu_custom_call.1} parent=0 // pred_fallthru
    _
  %v8 = vld [vmem:[%s0] sm:$0xff]
  %v9 = vld [vmem:[%s0 + $0x8] sm:$0xff]
  %v10 = vld [vmem:[%s0 + $0x10] sm:$0xff]
  %v11 = vld [vmem:[%s0 + $0x18] sm:$0xff]
  %v12 = vld [vmem:[%s0 + $0x20] sm:$0xff]
  %v13 = vld [vmem:[%s0 + $0x28] sm:$0xff]
  %v14 = vld [vmem:[%s0 + $0x30] sm:$0xff]
  %v15 = vld [vmem:[%s0 + $0x38] sm:$0xff]
  %v16 = vld [vmem:[%s0 + $0x40] sm:$0xff]
  %v17 = vld [vmem:[%s0 + $0x48] sm:$0xff]
  %v18 = vld [vmem:[%s0 + $0x50] sm:$0xff]
  %v19 = vld [vmem:[%s0 + $0x58] sm:$0xff]
  %v20 = vld [vmem:[%s0 + $0x60] sm:$0xff]
  %v21 = vld [vmem:[%s0 + $0x68] sm:$0xff]
  %v22 = vld [vmem:[%s0 + $0x70] sm:$0xff]
  %v23 = vld [vmem:[%s0 + $0x78] sm:$0xff]
  %40 = vrot.lane.b32.xlu0 %v8, 115
  %v41 = vpop.permute.xlu0 %40
  %42 = vrot.lane.b32.xlu0 %v9, 115
  %v43 = vpop.permute.xlu0 %42
  %44 = vrot.lane.b32.xlu0 %v10, 115
  %v45 = vpop.permute.xlu0 %44
  %46 = vrot.lane.b32.xlu0 %v11, 115
  %v47 = vpop.permute.xlu0 %46
  %48 = vrot.lane.b32.xlu0 %v12, 115
  %v49 = vpop.permute.xlu0 %48
  %50 = vrot.lane.b32.xlu0 %v13, 115
  %v51 = vpop.permute.xlu0 %50
  %52 = vrot.lane.b32.xlu0 %v14, 115
  %v53 = vpop.permute.xlu0 %52
  %54 = vrot.lane.b32.xlu0 %v15, 115
  %v55 = vpop.permute.xlu0 %54
  %56 = vrot.lane.b32.xlu0 %v16, 115
  %v57 = vpop.permute.xlu0 %56
  %58 = vrot.lane.b32.xlu0 %v17, 115
  %v59 = vpop.permute.xlu0 %58
  %60 = vrot.lane.b32.xlu0 %v18, 115
  %v61 = vpop.permute.xlu0 %60
  %62 = vrot.lane.b32.xlu0 %v19, 115
  %v63 = vpop.permute.xlu0 %62
  %64 = vrot.lane.b32.xlu0 %v20, 115
  %v65 = vpop.permute.xlu0 %64
  %66 = vrot.lane.b32.xlu0 %v21, 115
  %v67 = vpop.permute.xlu0 %66
  %68 = vrot.lane.b32.xlu0 %v22, 115
  %v69 = vpop.permute.xlu0 %68
  %70 = vrot.lane.b32.xlu0 %v23, 115
  %v71 = vpop.permute.xlu0 %70
  %vm88 = vcmask 23552
  %89 = vst.msk [vmem:[%s1] sm:$0xff] %vm88, %v41
  %90 = vst.msk [vmem:[%s1 + $0x8] sm:$0xff] %vm88, %v43
  %91 = vst.msk [vmem:[%s1 + $0x10] sm:$0xff] %vm88, %v45
  %92 = vst.msk [vmem:[%s1 + $0x18] sm:$0xff] %vm88, %v47
  %93 = vst.msk [vmem:[%s1 + $0x20] sm:$0xff] %vm88, %v49
  %94 = vst.msk [vmem:[%s1 + $0x28] sm:$0xff] %vm88, %v51
  %95 = vst.msk [vmem:[%s1 + $0x30] sm:$0xff] %vm88, %v53
  %96 = vst.msk [vmem:[%s1 + $0x38] sm:$0xff] %vm88, %v55
  %97 = vst.msk [vmem:[%s1 + $0x40] sm:$0xff] %vm88, %v57
  %98 = vst.msk [vmem:[%s1 + $0x48] sm:$0xff] %vm88, %v59
  %99 = vst.msk [vmem:[%s1 + $0x50] sm:$0xff] %vm88, %v61
  %100 = vst.msk [vmem:[%s1 + $0x58] sm:$0xff] %vm88, %v63
  %101 = vst.msk [vmem:[%s1 + $0x60] sm:$0xff] %vm88, %v65
  %102 = vst.msk [vmem:[%s1 + $0x68] sm:$0xff] %vm88, %v67
  %103 = vst.msk [vmem:[%s1 + $0x70] sm:$0xff] %vm88, %v69
  %104 = vst.msk [vmem:[%s1 + $0x78] sm:$0xff] %vm88, %v71
  %105 = vrot.lane.b32.xlu0 %v8, 3
  %v106 = vpop.permute.xlu0 %105
  %107 = vrot.lane.b32.xlu0 %v9, 3
  %v108 = vpop.permute.xlu0 %107
  %109 = vrot.lane.b32.xlu0 %v10, 3
  %v110 = vpop.permute.xlu0 %109
  %111 = vrot.lane.b32.xlu0 %v11, 3
  %v112 = vpop.permute.xlu0 %111
  %113 = vrot.lane.b32.xlu0 %v12, 3
  %v114 = vpop.permute.xlu0 %113
  %115 = vrot.lane.b32.xlu0 %v13, 3
  %v116 = vpop.permute.xlu0 %115
  %117 = vrot.lane.b32.xlu0 %v14, 3
  %v118 = vpop.permute.xlu0 %117
  %119 = vrot.lane.b32.xlu0 %v15, 3
  %v120 = vpop.permute.xlu0 %119
  %121 = vrot.lane.b32.xlu0 %v16, 3
  %v122 = vpop.permute.xlu0 %121
  %123 = vrot.lane.b32.xlu0 %v17, 3
  %v124 = vpop.permute.xlu0 %123
  %125 = vrot.lane.b32.xlu0 %v18, 3
  %v126 = vpop.permute.xlu0 %125
  %127 = vrot.lane.b32.xlu0 %v19, 3
  %v128 = vpop.permute.xlu0 %127
  %129 = vrot.lane.b32.xlu0 %v20, 3
  %v130 = vpop.permute.xlu0 %129
  %131 = vrot.lane.b32.xlu0 %v21, 3
  %v132 = vpop.permute.xlu0 %131
  %133 = vrot.lane.b32.xlu0 %v22, 3
  %v134 = vpop.permute.xlu0 %133
  %135 = vrot.lane.b32.xlu0 %v23, 3
  %v136 = vpop.permute.xlu0 %135
  %vm153 = vcmask 130072
  %154 = vst.msk [vmem:[%s1] sm:$0xff] %vm153, %v106
  %155 = vst.msk [vmem:[%s1 + $0x8] sm:$0xff] %vm153, %v108
  %156 = vst.msk [vmem:[%s1 + $0x10] sm:$0xff] %vm153, %v110
  %157 = vst.msk [vmem:[%s1 + $0x18] sm:$0xff] %vm153, %v112
  %158 = vst.msk [vmem:[%s1 + $0x20] sm:$0xff] %vm153, %v114
  %159 = vst.msk [vmem:[%s1 + $0x28] sm:$0xff] %vm153, %v116
  %160 = vst.msk [vmem:[%s1 + $0x30] sm:$0xff] %vm153, %v118
  %161 = vst.msk [vmem:[%s1 + $0x38] sm:$0xff] %vm153, %v120
  %162 = vst.msk [vmem:[%s1 + $0x40] sm:$0xff] %vm153, %v122
  %163 = vst.msk [vmem:[%s1 + $0x48] sm:$0xff] %vm153, %v124
  %164 = vst.msk [vmem:[%s1 + $0x50] sm:$0xff] %vm153, %v126
  %165 = vst.msk [vmem:[%s1 + $0x58] sm:$0xff] %vm153, %v128
  %166 = vst.msk [vmem:[%s1 + $0x60] sm:$0xff] %vm153, %v130
  %167 = vst.msk [vmem:[%s1 + $0x68] sm:$0xff] %vm153, %v132
  %168 = vst.msk [vmem:[%s1 + $0x70] sm:$0xff] %vm153, %v134
  %169 = vst.msk [vmem:[%s1 + $0x78] sm:$0xff] %vm153, %v136
  // Predicated region
  $region6: #{tpu_custom_call.1} parent=0 // pred_check
    _
  $region7: #{tpu_custom_call.1} parent=0 // pred_check_branch
    %171 = sbr.rel (0) target = $region9
  $region8: #{tpu_custom_call.1} parent=0 // pred_region
    _
  $region9: #{tpu_custom_call.1} parent=0 // pred_fallthru
    _
  // Predicated region
  $region10: #{tpu_custom_call.1} parent=0 // pred_check
    _
  $region11: #{tpu_custom_call.1} parent=0 // pred_check_branch
    %173 = sbr.rel (0) target = $region13
  $region12: #{tpu_custom_call.1} parent=0 // pred_region
    _
  $region13: #{tpu_custom_call.1} parent=0 // pred_fallthru
    _

</llo_original>
